<compile_context>
chip_gen: v5e
topology: v5e:2x2
jax: 0.10.0
libtpu: 0.0.40
codegen_flags: <defaults>
</compile_context>

<pallas_src>
import jax
import jax.numpy as jnp
from jax.experimental import pallas as pl
from jax.experimental.pallas import tpu as pltpu


# ---------------------------------------------------------------------------
# Kernels
# ---------------------------------------------------------------------------
def _mlp_kernel_acc(x_ref, wg_ref, wu_ref, w2_ref, o_ref, acc_ref):
    """Variant with a separate f32 accumulator (used when out dtype != f32)."""
    # x_ref:   (tm, H)  token tile, resident across the I axis
    # wg_ref:  (H, ti)  gate-projection weight chunk
    # wu_ref:  (H, ti)  up-projection weight chunk
    # w2_ref:  (ti, H)  down-projection weight chunk
    # o_ref:   (tm, H)  output tile (written on the last I chunk)
    # acc_ref: (tm, H)  f32 accumulator scratch
    j = pl.program_id(1)

    @pl.when(j == 0)
    def _():
        acc_ref[...] = jnp.zeros_like(acc_ref)

    x = x_ref[...]
    # Two independent MXU matmuls with f32 accumulation — no (tm, 2I) intermediate.
    gate = jnp.dot(x, wg_ref[...], preferred_element_type=jnp.float32)
    up = jnp.dot(x, wu_ref[...], preferred_element_type=jnp.float32)
    # SiluAndMul epilogue in f32 (sigmoid on EUP, muls on VPU).
    h = gate * jax.nn.sigmoid(gate) * up
    acc_ref[...] += jnp.dot(h.astype(w2_ref.dtype), w2_ref[...],
                            preferred_element_type=jnp.float32)

    @pl.when(j == pl.num_programs(1) - 1)
    def _():
        o_ref[...] = acc_ref[...].astype(o_ref.dtype)


def _mlp_kernel_f32out(x_ref, wg_ref, wu_ref, w2_ref, o_ref):
    """f32-output variant: accumulate directly in the resident output block
    (saves tm*H*4 bytes of VMEM — matters most on v7x's 64 MiB)."""
    j = pl.program_id(1)

    @pl.when(j == 0)
    def _():
        o_ref[...] = jnp.zeros_like(o_ref)

    x = x_ref[...]
    gate = jnp.dot(x, wg_ref[...], preferred_element_type=jnp.float32)
    up = jnp.dot(x, wu_ref[...], preferred_element_type=jnp.float32)
    h = gate * jax.nn.sigmoid(gate) * up
    o_ref[...] += jnp.dot(h.astype(w2_ref.dtype), w2_ref[...],
                          preferred_element_type=jnp.float32)


# ---------------------------------------------------------------------------
# Tiling helpers
# ---------------------------------------------------------------------------
def _chip_defaults():
    """Per-generation (tm, ti, vmem_capacity_bytes) defaults."""
    vmem_cap = 128 * 1024 * 1024
    try:
        info = pltpu.get_tpu_info()
        vmem_cap = int(getattr(info, "vmem_capacity_bytes", vmem_cap))
    except Exception:
        pass
    if vmem_cap >= 100 * 1024 * 1024:
        # v5e / v6e (128 MiB VMEM): big token tile keeps the I-loop MXU-bound.
        return 768, 512, vmem_cap
    # v7x (64 MiB VMEM): ~310 flop/byte break-even → tm=512 already MXU-bound.
    return 512, 256, vmem_cap


def _pick_ti_merged(I, ti_req):
    """Largest ti <= ti_req that is a multiple of 128 and divides I (else None)."""
    if I % 128 != 0:
        return None
    ti = (min(ti_req, I) // 128) * 128
    while ti >= 128:
        if I % ti == 0:
            return ti
        ti -= 128
    return None


def _vmem_footprint(tm, ti, H, x_bytes, w_bytes, out_bytes, use_acc):
    f = 2 * tm * H * x_bytes                    # x tile, double buffered
    f += 2 * (2 * H * ti + ti * H) * w_bytes    # wg + wu + w2 chunks, double buffered
    f += 2 * tm * H * out_bytes                 # out tile, double buffered
    if use_acc:
        f += tm * H * 4                         # f32 accumulator scratch
    return f


# ---------------------------------------------------------------------------
# Wrapper
# ---------------------------------------------------------------------------
def internlm2_mlp(x, w_gate_up, w2, *, tm=None, ti=None,
                  vmem_limit_bytes=None, force_bf16_weights=False):
    """InternLM2 MLP forward.

    x:          [T, H]
    w_gate_up:  [H, 2*I]   (merged gate|up, already transposed to in x out)
    w2:         [I, H]
    returns     [T, H]
    """
    T, H = x.shape
    two_I = w_gate_up.shape[1]
    I = two_I // 2
    assert w_gate_up.shape == (H, two_I)
    assert w2.shape == (I, H)
    out_dtype = x.dtype

    # Optional: halve weight DMA bytes for f32 checkpoints (weights are the
    # binding resource of this schedule); accumulation stays f32 regardless.
    if force_bf16_weights and w_gate_up.dtype != jnp.bfloat16:
        w_gate_up = w_gate_up.astype(jnp.bfloat16)
        w2 = w2.astype(jnp.bfloat16)

    x_bytes = jnp.dtype(x.dtype).itemsize
    w_bytes = jnp.dtype(w_gate_up.dtype).itemsize
    out_bytes = jnp.dtype(out_dtype).itemsize

    tm_def, ti_def, vmem_cap = _chip_defaults()
    tm = int(tm) if tm is not None else tm_def
    ti = int(ti) if ti is not None else ti_def

    # --- token tile: sublane-aligned, capped to the actual token count -----
    sub = 16 if x.dtype == jnp.bfloat16 else 8
    tm = max(sub, min(tm, ((T + sub - 1) // sub) * sub))
    tm = ((tm + sub - 1) // sub) * sub

    use_acc = out_dtype != jnp.float32

    # --- intermediate chunk: zero-copy merged path when ti | I, ti % 128 == 0
    ti_merged = _pick_ti_merged(I, ti)
    merged = ti_merged is not None
    ti = ti_merged if merged else max(1, min(ti, I))

    # --- shrink tiles until the double-buffered footprint fits this chip ---
    budget = int(vmem_cap * 0.85)
    while (_vmem_footprint(tm, ti, H, x_bytes, w_bytes, out_bytes, use_acc) > budget
           and tm > sub):
        tm = max(sub, ((tm // 2 + sub - 1) // sub) * sub)
    while (_vmem_footprint(tm, ti, H, x_bytes, w_bytes, out_bytes, use_acc) > budget
           and ti > 128):
        nxt = _pick_ti_merged(I, ti // 2) if merged else max(128, ti // 2)
        if nxt is None or nxt >= ti:
            break
        ti = nxt

    # --- token padding (padded rows give zero output and are sliced off) ---
    T_pad = ((T + tm - 1) // tm) * tm
    if T_pad != T:
        x = jnp.pad(x, ((0, T_pad - T), (0, 0)))

    # --- weight operands / specs -------------------------------------------
    if merged:
        # Zero-copy: pass the merged weight twice; the up half starts at block
        # offset I // ti.  No weight slicing or padding per call.
        I_pad = I
        up_off = I // ti

        def _gate_map(i, j):
            return (0, j)

        def _up_map(i, j):
            return (0, j + up_off)

        wg_operand = w_gate_up
        wu_operand = w_gate_up
        w2_operand = w2
        wg_spec = pl.BlockSpec((H, ti), _gate_map)
        wu_spec = pl.BlockSpec((H, ti), _up_map)
    else:
        # Fallback for tiny / unaligned shapes only: split + zero-pad
        # (padded gate/up columns give h == 0 and padded w2 rows are zero).
        I_pad = ((I + ti - 1) // ti) * ti
        wg = w_gate_up[:, :I]
        wu = w_gate_up[:, I:]
        if I_pad != I:
            wg = jnp.pad(wg, ((0, 0), (0, I_pad - I)))
            wu = jnp.pad(wu, ((0, 0), (0, I_pad - I)))
            w2 = jnp.pad(w2, ((0, I_pad - I), (0, 0)))
        wg_operand, wu_operand, w2_operand = wg, wu, w2
        wg_spec = pl.BlockSpec((H, ti), lambda i, j: (0, j))
        wu_spec = pl.BlockSpec((H, ti), lambda i, j: (0, j))

    grid = (T_pad // tm, I_pad // ti)

    # --- explicit VMEM limit from the real footprint (prereq for big tiles) -
    footprint = _vmem_footprint(tm, ti, H, x_bytes, w_bytes, out_bytes, use_acc)
    if vmem_limit_bytes is None:
        vmem_limit_bytes = min(max(int(footprint * 1.2) + (4 << 20), 32 << 20),
                               vmem_cap)

    # --- advisory cost estimate for the XLA scheduler -----------------------
    cost = pl.CostEstimate(
        flops=6 * T_pad * H * I_pad,
        transcendentals=T_pad * I_pad,
        bytes_accessed=(3 * H * I_pad * w_bytes) * grid[0]
                       + T_pad * H * (x_bytes + out_bytes),
    )

    kernel = _mlp_kernel_acc if use_acc else _mlp_kernel_f32out
    scratch = [pltpu.VMEM((tm, H), jnp.float32)] if use_acc else []

    out = pl.pallas_call(
        kernel,
        out_shape=jax.ShapeDtypeStruct((T_pad, H), out_dtype),
        grid_spec=pltpu.PrefetchScalarGridSpec(
            num_scalar_prefetch=0,
            grid=grid,
            in_specs=[
                # token tile of x: constant block index across the I axis, so it
                # stays VMEM-resident while weight chunks stream past it.
                pl.BlockSpec((tm, H), lambda i, j: (i, 0)),
                wg_spec,                                       # gate weight chunk
                wu_spec,                                       # up weight chunk
                pl.BlockSpec((ti, H), lambda i, j: (j, 0)),    # down-proj chunk
            ],
            out_specs=pl.BlockSpec((tm, H), lambda i, j: (i, 0)),
            scratch_shapes=scratch,
        ),
        compiler_params=pltpu.CompilerParams(
            dimension_semantics=("parallel", "arbitrary"),
            vmem_limit_bytes=int(vmem_limit_bytes),
        ),
        cost_estimate=cost,
    )(x, wg_operand, wu_operand, w2_operand)

    return out[:T]


# ---------------------------------------------------------------------------
# Reference
# ---------------------------------------------------------------------------
def internlm2_mlp_ref(x, w_gate_up, w2):
    I = w_gate_up.shape[1] // 2
    gate_up = x.astype(jnp.float32) @ w_gate_up.astype(jnp.float32)
    gate, up = gate_up[:, :I], gate_up[:, I:]
    h = jax.nn.silu(gate) * up
    return h @ w2.astype(jnp.float32)


if __name__ == "__main__":
    key = jax.random.PRNGKey(0)

    # --- Test 1: module-consistent small shapes: batch=2, seq=8 -> 16 tokens,
    #             hidden_size=32, intermediate_size=64, f32 (fallback path).
    batch, seq, H, I = 2, 8, 32, 64
    T = batch * seq
    k1, k2, k3, key = jax.random.split(key, 4)
    x = jax.random.normal(k1, (T, H), dtype=jnp.float32)
    w_gate_up = jax.random.normal(k2, (H, 2 * I), dtype=jnp.float32) * 0.05
    w2 = jax.random.normal(k3, (I, H), dtype=jnp.float32) * 0.05

    out = jax.block_until_ready(internlm2_mlp(x, w_gate_up, w2))
    ref = internlm2_mlp_ref(x, w_gate_up, w2)
    assert out.shape == (T, H)
    assert jnp.allclose(out, ref, atol=1e-5, rtol=1e-5), "f32 small-shape mismatch"

    # --- Test 2: ragged token count + multi-tile grid, 128-aligned I
    #             (exercises the zero-copy merged-weight path, token padding,
    #             I-chunk streaming and direct f32 output accumulation).
    T2, H2, I2 = 13, 128, 384
    k1, k2, k3, key = jax.random.split(key, 4)
    x2 = jax.random.normal(k1, (T2, H2), dtype=jnp.float32)
    wgu2 = jax.random.normal(k2, (H2, 2 * I2), dtype=jnp.float32) * 0.05
    w22 = jax.random.normal(k3, (I2, H2), dtype=jnp.float32) * 0.05

    out2 = jax.block_until_ready(internlm2_mlp(x2, wgu2, w22, tm=8, ti=128))
    ref2 = internlm2_mlp_ref(x2, wgu2, w22)
    assert jnp.allclose(out2, ref2, atol=1e-4, rtol=1e-4), "ragged/chunked mismatch"

    # --- Test 3: bf16 production-style dtype (bf16 MXU path, f32 accumulator
    #             scratch since the output dtype is bf16).
    xb = x2.astype(jnp.bfloat16)
    wgub = wgu2.astype(jnp.bfloat16)
    w2b = w22.astype(jnp.bfloat16)
    out3 = jax.block_until_ready(internlm2_mlp(xb, wgub, w2b, tm=16, ti=128))
    ref3 = internlm2_mlp_ref(xb, wgub, w2b)
    assert jnp.allclose(out3.astype(jnp.float32), ref3, atol=8e-2, rtol=8e-2), \
        "bf16 mismatch"

    print("KERNEL_OK")
</pallas_src>

<mosaic_0001>
module attributes {stable_mosaic.version = 11 : i64} {
  func.func @_mlp_kernel_f32out(%arg0: i32, %arg1: i32, %arg2: memref<16x32xf32, #tpu.memory_space<vmem>>, %arg3: memref<32x64xf32, #tpu.memory_space<vmem>>, %arg4: memref<32x64xf32, #tpu.memory_space<vmem>>, %arg5: memref<64x32xf32, #tpu.memory_space<vmem>>, %arg6: memref<16x32xf32, #tpu.memory_space<vmem>>) attributes {dimension_semantics = [#tpu.dimension_semantics<parallel>, #tpu.dimension_semantics<arbitrary>], iteration_bounds = array<i64: 1, 1>, scalar_prefetch = 0 : i64, scratch_operands = 0 : i64, tpu.core_type = #tpu.core_type<tc>, window_params = [{transform_indices = @transform_0, window_bounds = array<i64: 16, 32>}, {transform_indices = @transform_1, window_bounds = array<i64: 32, 64>}, {transform_indices = @transform_2, window_bounds = array<i64: 32, 64>}, {transform_indices = @transform_3, window_bounds = array<i64: 64, 32>}, {transform_indices = @transform_4, window_bounds = array<i64: 16, 32>}]} {
    %c0_i32 = arith.constant 0 : i32
    %0 = arith.cmpi eq, %arg1, %c0_i32 : i32
    %1 = arith.extui %0 : i1 to i32
    %c0_i32_0 = arith.constant 0 : i32
    %2 = arith.cmpi ne, %1, %c0_i32_0 : i32
    scf.if %2 {
      %cst_15 = arith.constant 0.000000e+00 : f32
      %20 = vector.broadcast %cst_15 : f32 to vector<16x32xf32>
      %c0_16 = arith.constant 0 : index
      %c0_17 = arith.constant 0 : index
      %21 = vector.load %arg6[%c0_16, %c0_17] : memref<16x32xf32, #tpu.memory_space<vmem>>, vector<16x32xf32>
      tpu.vector_store %arg6[%c0_16, %c0_17], %20 {strides = array<i32>} : memref<16x32xf32, #tpu.memory_space<vmem>>, vector<16x32xf32>,
    } else {
    }
    %c0 = arith.constant 0 : index
    %c0_1 = arith.constant 0 : index
    %3 = vector.load %arg2[%c0, %c0_1] : memref<16x32xf32, #tpu.memory_space<vmem>>, vector<16x32xf32>
    %c0_2 = arith.constant 0 : index
    %c0_3 = arith.constant 0 : index
    %4 = vector.load %arg3[%c0_2, %c0_3] : memref<32x64xf32, #tpu.memory_space<vmem>>, vector<32x64xf32>
    %cst = arith.constant dense<0.000000e+00> : vector<16x64xf32>
    %5 = tpu.matmul %3, %4, %cst {dimension_numbers = #tpu.dot_dimension_numbers<[1], [0], [0], [1], [0, 0, 1, 1], [], []>} : vector<16x32xf32>, vector<32x64xf32>, vector<16x64xf32> -> vector<16x64xf32>
    %c0_4 = arith.constant 0 : index
    %c0_5 = arith.constant 0 : index
    %6 = vector.load %arg4[%c0_4, %c0_5] : memref<32x64xf32, #tpu.memory_space<vmem>>, vector<32x64xf32>
    %cst_6 = arith.constant dense<0.000000e+00> : vector<16x64xf32>
    %7 = tpu.matmul %3, %6, %cst_6 {dimension_numbers = #tpu.dot_dimension_numbers<[1], [0], [0], [1], [0, 0, 1, 1], [], []>} : vector<16x32xf32>, vector<32x64xf32>, vector<16x64xf32> -> vector<16x64xf32>
    %8 = arith.negf %5 : vector<16x64xf32>
    %9 = math.exp %8 : vector<16x64xf32>
    %cst_7 = arith.constant 1.000000e+00 : f32
    %10 = vector.broadcast %cst_7 : f32 to vector<16x64xf32>
    %11 = arith.addf %10, %9 : vector<16x64xf32>
    %12 = arith.divf %10, %11 : vector<16x64xf32>
    %13 = arith.mulf %5, %12 : vector<16x64xf32>
    %14 = arith.mulf %13, %7 : vector<16x64xf32>
    %c0_8 = arith.constant 0 : index
    %c0_9 = arith.constant 0 : index
    %15 = vector.load %arg6[%c0_8, %c0_9] : memref<16x32xf32, #tpu.memory_space<vmem>>, vector<16x32xf32>
    %c0_10 = arith.constant 0 : index
    %c0_11 = arith.constant 0 : index
    %16 = vector.load %arg5[%c0_10, %c0_11] : memref<64x32xf32, #tpu.memory_space<vmem>>, vector<64x32xf32>
    %cst_12 = arith.constant dense<0.000000e+00> : vector<16x32xf32>
    %17 = tpu.matmul %14, %16, %cst_12 {dimension_numbers = #tpu.dot_dimension_numbers<[1], [0], [0], [1], [0, 0, 1, 1], [], []>} : vector<16x64xf32>, vector<64x32xf32>, vector<16x32xf32> -> vector<16x32xf32>
    %18 = arith.addf %15, %17 : vector<16x32xf32>
    %c0_13 = arith.constant 0 : index
    %c0_14 = arith.constant 0 : index
    %19 = vector.load %arg6[%c0_13, %c0_14] : memref<16x32xf32, #tpu.memory_space<vmem>>, vector<16x32xf32>
    tpu.vector_store %arg6[%c0_13, %c0_14], %18 {strides = array<i32>} : memref<16x32xf32, #tpu.memory_space<vmem>>, vector<16x32xf32>,
    return
  }
  func.func @transform_0(%arg0: i32, %arg1: i32) -> (i32, i32) {
    %c0_i32 = arith.constant 0 : i32
    %c0_i32_0 = arith.constant 0 : i32
    return %arg0, %c0_i32 : i32, i32
  }
  func.func @transform_1(%arg0: i32, %arg1: i32) -> (i32, i32) {
    %c0_i32 = arith.constant 0 : i32
    %c0_i32_0 = arith.constant 0 : i32
    return %c0_i32, %arg1 : i32, i32
  }
  func.func @transform_2(%arg0: i32, %arg1: i32) -> (i32, i32) {
    %c0_i32 = arith.constant 0 : i32
    %c0_i32_0 = arith.constant 0 : i32
    return %c0_i32, %arg1 : i32, i32
  }
  func.func @transform_3(%arg0: i32, %arg1: i32) -> (i32, i32) {
    %c0_i32 = arith.constant 0 : i32
    %c0_i32_0 = arith.constant 0 : i32
    return %arg1, %c0_i32 : i32, i32
  }
  func.func @transform_4(%arg0: i32, %arg1: i32) -> (i32, i32) {
    %c0_i32 = arith.constant 0 : i32
    %c0_i32_0 = arith.constant 0 : i32
    return %arg0, %c0_i32 : i32, i32
  }
}

</mosaic_0001>

<llo_original>
// kernel: tpu_custom_call.1
$region0: #{tpu_custom_call.1}
  #allocation0 [shape = 'u32[]', space=smem, size = 0x4, offset = 0x4, fixed_abs, tag = 'smem constant byte address 0x4 - core index']
  #allocation1 [shape = 'u32[72,128]{1,0:T(1,128)}', space=vmem, size = 0x9000, scoped, tag = 'internal scratch']
  %s0 = inlined_call_operand.vmem [shape: f32[16,32], index: 0, kind: input, shape index: {}]
  %s1 = inlined_call_operand.vmem [shape: f32[32,64], index: 1, kind: input, shape index: {}]
  %s2 = inlined_call_operand.vmem [shape: f32[32,64], index: 2, kind: input, shape index: {}]
  %s3 = inlined_call_operand.vmem [shape: f32[64,32], index: 3, kind: input, shape index: {}]
  %s4 = inlined_call_operand.hbm [shape: f32[16,32], index: 4, kind: output, shape index: {}]
  %s5 = sld [smem:[#allocation0]]
  $region30: #{tpu_custom_call.1} parent=0
    _
  %s7 = ssub.s32 1, %s5
  %s8 = scalar_select 0, %s7, %s5
  $region1: #{tpu_custom_call.1} parent=0
    #allocation2 [shape = 'u8[8192]{0}', space=vmem, size = 0x2000, scoped, tag = 'output window, operand 0, single buffered']
    #allocation3 [shape = 's32[1]{0}', space=sflag, size = 0x4, scoped, tag = 'scoped memory for tpu_custom_call.1']
    %9 = vsyncpa [#allocation3], 0
    // Predicated region
    $region2: #{tpu_custom_call.1} parent=1 // pred_check
      _
    $region3: #{tpu_custom_call.1} parent=1 // pred_check_branch
      %11 = sbr.rel (0) target = $region5
    $region4: #{tpu_custom_call.1} parent=1 // pred_region
      _
    $region5: #{tpu_custom_call.1} parent=1 // pred_fallthru
      _
    // Predicated region
    $region6: #{tpu_custom_call.1} parent=1 // pred_check
      _
    $region7: #{tpu_custom_call.1} parent=1 // pred_check_branch
      %13 = sbr.rel (0) target = $region9
    $region8: #{tpu_custom_call.1} parent=1 // pred_region
      _
    $region9: #{tpu_custom_call.1} parent=1 // pred_fallthru
      _
    // Predicated region
    $region10: #{tpu_custom_call.1} parent=1 // pred_check
      _
    $region11: #{tpu_custom_call.1} parent=1 // pred_check_branch
      %15 = sbr.rel (0) target = $region13
    $region12: #{tpu_custom_call.1} parent=1 // pred_region
      _
    $region13: #{tpu_custom_call.1} parent=1 // pred_fallthru
      _
    // Predicated region
    $region14: #{tpu_custom_call.1} parent=1 // pred_check
      _
    $region15: #{tpu_custom_call.1} parent=1 // pred_check_branch
      %17 = sbr.rel (0) target = $region17
    $region16: #{tpu_custom_call.1} parent=1 // pred_region
      _
    $region17: #{tpu_custom_call.1} parent=1 // pred_fallthru
      _
    %p18 = scmp.eq.s32.totalorder 0, 0
    // Predicated region
    $region18: #{tpu_custom_call.1} parent=1 // pred_check
      %p19 = pneg %p18
    $region19: #{tpu_custom_call.1} parent=1 // pred_check_branch
      %21 = sbr.rel (%p19) target = $region21
    $region20: #{tpu_custom_call.1} parent=1 // pred_region
      %vm22 = vcmask 261120
      %23 = vst.msk [vmem:[#allocation2] sm:$0xff] %vm22, 0.0
      %24 = vst.msk [vmem:[#allocation2 + $0x8] sm:$0xff] %vm22, 0.0
    $region21: #{tpu_custom_call.1} parent=1 // pred_fallthru
      _
    %v25 = vld [vmem:[%s0] sm:$0xff]
    %v26 = vld [vmem:[%s0 + $0x8] sm:$0xff]
    %v27 = vld [vmem:[%s1] sm:$0xff]
    %v28 = vld [vmem:[%s1 + $0x8] sm:$0xff]
    %v29 = vld [vmem:[%s1 + $0x10] sm:$0xff]
    %v30 = vld [vmem:[%s1 + $0x18] sm:$0xff]
    %vm31 = vcmask 261120
    %v33 = vsel %vm31, %v25, 0
    %v36 = vsel %vm31, %v26, 0
    %38 = vmatpush.msra.mxu0 0.0
    %39 = vmatpush.msra.mxu0 0.0
    %40 = vmatpush.msra.mxu0 0.0
    %41 = vmatpush.msra.mxu0 0.0
    %42 = vmatpush.msra.mxu0 0.0
    %43 = vmatpush.msra.mxu0 0.0
    %44 = vmatpush.msra.mxu0 0.0
    %45 = vmatpush.msra.mxu0 0.0
    %46 = vmatpush.msra.mxu0 0.0
    %47 = vmatpush.msra.mxu0 0.0
    %48 = vmatpush.msra.mxu0 0.0
    %49 = vmatpush.msra.mxu0 0.0
    %50 = vmatpush.msra.mxu0 %v30
    %51 = vmatpush.msra.mxu0 %v29
    %52 = vmatpush.msra.mxu0 %v28
    %53 = vmatpush.msra.mxu0 %v27
    %54 = vmatmul.f32.gmra.mxu0 %v33
    %v55 = vpop.f32.mrf.mxu0
    %v56 = vadd.f32 0.0, %v55
    %57 = vmatmul.f32.gmra.mxu0 %v36
    %v58 = vpop.f32.mrf.mxu0
    %v59 = vadd.f32 0.0, %v58
    %60 = vdwg.mxu0
    %v61 = vld [vmem:[%s2] sm:$0xff]
    %v62 = vld [vmem:[%s2 + $0x8] sm:$0xff]
    %v63 = vld [vmem:[%s2 + $0x10] sm:$0xff]
    %v64 = vld [vmem:[%s2 + $0x18] sm:$0xff]
    %65 = vmatpush.msra.mxu0 0.0
    %66 = vmatpush.msra.mxu0 0.0
    %67 = vmatpush.msra.mxu0 0.0
    %68 = vmatpush.msra.mxu0 0.0
    %69 = vmatpush.msra.mxu0 0.0
    %70 = vmatpush.msra.mxu0 0.0
    %71 = vmatpush.msra.mxu0 0.0
    %72 = vmatpush.msra.mxu0 0.0
    %73 = vmatpush.msra.mxu0 0.0
    %74 = vmatpush.msra.mxu0 0.0
    %75 = vmatpush.msra.mxu0 0.0
    %76 = vmatpush.msra.mxu0 0.0
    %77 = vmatpush.msra.mxu0 %v64
    %78 = vmatpush.msra.mxu0 %v63
    %79 = vmatpush.msra.mxu0 %v62
    %80 = vmatpush.msra.mxu0 %v61
    %81 = vmatmul.f32.gmra.mxu0 %v33
    %v82 = vpop.f32.mrf.mxu0
    %v83 = vadd.f32 0.0, %v82
    %84 = vmatmul.f32.gmra.mxu0 %v36
    %v85 = vpop.f32.mrf.mxu0
    %v86 = vadd.f32 0.0, %v85
    %87 = vdwg.mxu0
    %v88 = vxor.u32 %v56, 2147483648
    %v89 = vxor.u32 %v59, 2147483648
    %v90 = vmul.f32 %v88, 1.442695
    %v91 = vpow.pop %v90
    %v92 = vmul.f32 %v89, 1.442695
    %v93 = vpow.pop %v92
    %v94 = vadd.f32 %v91, 1.0
    %v95 = vadd.f32 %v93, 1.0
    %v96 = vrcp.pop %v94
    %v97 = vmul.f32 %v94, %v96
    %v98 = vsub.f32 1.0, %v97
    %v99 = vmul.f32 %v96, %v98
    %v100 = vadd.f32 %v96, %v99
    %vm101 = vweird.f32 %v94
    %vm102 = vweird.f32 %v96
    %vm103 = vmor %vm101, %vm102
    %v104 = vsel %vm103, %v96, %v100
    %v105 = vand.u32 2147483647, %v94
    %vm106 = vcmp.eq.f32.partialorder %v105, 8.507059e+37
    %v107 = vand.u32 %v94, 2147483648
    %v108 = vor.u32 1.1754944e-38, %v107
    %v109 = vsel %vm106, %v108, %v104
    %v110 = vmul.f32 1.0, %v109
    %v111 = vrcp.pop %v95
    %v112 = vmul.f32 %v95, %v111
    %v113 = vsub.f32 1.0, %v112
    %v114 = vmul.f32 %v111, %v113
    %v115 = vadd.f32 %v111, %v114
    %vm116 = vweird.f32 %v95
    %vm117 = vweird.f32 %v111
    %vm118 = vmor %vm116, %vm117
    %v119 = vsel %vm118, %v111, %v115
    %v120 = vand.u32 2147483647, %v95
    %vm121 = vcmp.eq.f32.partialorder %v120, 8.507059e+37
    %v122 = vand.u32 %v95, 2147483648
    %v123 = vor.u32 1.1754944e-38, %v122
    %v124 = vsel %vm121, %v123, %v119
    %v125 = vmul.f32 1.0, %v124
    %v126 = vmul.f32 %v56, %v110
    %v127 = vmul.f32 %v59, %v125
    %v128 = vmul.f32 %v126, %v83
    %v129 = vmul.f32 %v127, %v86
    %v130 = vld [vmem:[#allocation2] sm:$0xff]
    %v131 = vld [vmem:[#allocation2 + $0x8] sm:$0xff]
    %v132 = vld [vmem:[%s3] sm:$0xff]
    %v133 = vld [vmem:[%s3 + $0x8] sm:$0xff]
    %v134 = vld [vmem:[%s3 + $0x10] sm:$0xff]
    %v135 = vld [vmem:[%s3 + $0x18] sm:$0xff]
    %v136 = vld [vmem:[%s3 + $0x20] sm:$0xff]
    %v137 = vld [vmem:[%s3 + $0x28] sm:$0xff]
    %v138 = vld [vmem:[%s3 + $0x30] sm:$0xff]
    %v139 = vld [vmem:[%s3 + $0x38] sm:$0xff]
    %vm140 = vcmask 523264
    %v142 = vsel %vm140, %v128, 0
    %v145 = vsel %vm140, %v129, 0
    %147 = vmatpush.msra.mxu0 0.0
    %148 = vmatpush.msra.mxu0 0.0
    %149 = vmatpush.msra.mxu0 0.0
    %150 = vmatpush.msra.mxu0 0.0
    %151 = vmatpush.msra.mxu0 0.0
    %152 = vmatpush.msra.mxu0 0.0
    %153 = vmatpush.msra.mxu0 0.0
    %154 = vmatpush.msra.mxu0 0.0
    %155 = vmatpush.msra.mxu0 %v139
    %156 = vmatpush.msra.mxu0 %v138
    %157 = vmatpush.msra.mxu0 %v137
    %158 = vmatpush.msra.mxu0 %v136
    %159 = vmatpush.msra.mxu0 %v135
    %160 = vmatpush.msra.mxu0 %v134
    %161 = vmatpush.msra.mxu0 %v133
    %162 = vmatpush.msra.mxu0 %v132
    %163 = vmatmul.f32.gmra.mxu0 %v142
    %v164 = vpop.f32.mrf.mxu0
    %v165 = vadd.f32 0.0, %v164
    %166 = vmatmul.f32.gmra.mxu0 %v145
    %v167 = vpop.f32.mrf.mxu0
    %v168 = vadd.f32 0.0, %v167
    %169 = vdwg.mxu0
    %v170 = vadd.f32 %v130, %v165
    %v171 = vadd.f32 %v131, %v168
    %172 = vst.msk [vmem:[#allocation2] sm:$0xff] %vm31, %v170
    %173 = vst.msk [vmem:[#allocation2 + $0x8] sm:$0xff] %vm31, %v171
    // Predicated region
    $region22: #{tpu_custom_call.1} parent=1 // pred_check
      _
    $region23: #{tpu_custom_call.1} parent=1 // pred_check_branch
      %175 = sbr.rel (0) target = $region25
    $region24: #{tpu_custom_call.1} parent=1 // pred_region
      %177 = vsyncadd [#allocation3], 0
      %s178 = sshll.u32 [#allocation2], 4
      %s179 = int_to_ptr.vmem [resolvable:$true] %s178
      %s180 = sshll.u32 %s4, 4
      %s181 = int_to_ptr.hbm [resolvable:$true] %s180
      %186 = dma.vmem_to_hbm [thread:$0]  %s179, 256, %s181, [#allocation3], 128, 128, 8
    $region25: #{tpu_custom_call.1} parent=1 // pred_fallthru
      _
    // Predicated region
    $region26: #{tpu_custom_call.1} parent=1 // pred_check
      _
    $region27: #{tpu_custom_call.1} parent=1 // pred_check_branch
      %188 = sbr.rel (0) target = $region29
    $region28: #{tpu_custom_call.1} parent=1 // pred_region
      %190 = dma.done [#allocation3], 256
    $region29: #{tpu_custom_call.1} parent=1 // pred_fallthru
      _
    %191 = vsyncpa [#allocation3], 1

</llo_original>
